<compile_context>
chip_gen: v7x
topology: tpu7x:2x2x1
jax: 0.10.0
libtpu: 0.0.40
codegen_flags: <defaults>
</compile_context>

<pallas_src>
import jax
import jax.numpy as jnp
from jax.experimental import pallas as pl
from jax.experimental.pallas import tpu as pltpu

# ---------------------------------------------------------------------------
# Model hyper-parameters (mirroring args_d in the PyTorch script)
# ---------------------------------------------------------------------------
FFN_NUM_LAYERS = 2          # args.hidden_layers
FFN_HIDDEN_DIM = 32         # args.hidden_dim (small for the demo)
FFN_OUTPUT_DIM = 1801       # fixed in args_d
NORM_RANGE = (50, 550)      # fixed in args_d
NORM_WIN = 640              # 5*128 lane-aligned window covering [50, 550)
LLM_LOGITS_DIM = 32         # self.LLM.classifier.out_proj.out_features (synthetic)
VOCAB = 64                  # synthetic vocab for the LLM stand-in
SEQ = 8                     # synthetic sequence length
EMB_DIM = 16                # synthetic embedding width
BATCH = 2


def _round_up(x, m):
    return ((x + m - 1) // m) * m


# ---------------------------------------------------------------------------
# Pallas kernel: fused LLM head matmul + (ReLU -> Dropout -> Linear) x3,
# then exp + range-normalize.  Dropout (p=0.2) is identity in eval mode.
# TODO(synk): training-mode dropout RNG not reproduced (inference forward only).
# ---------------------------------------------------------------------------
def _smile2spec_kernel(pooled_ref, hw_ref, hb_ref,
                       w1_ref, b1_ref, w2_ref, b2_ref, w3_ref, b3_ref,
                       o_ref):
    bf16 = jnp.bfloat16
    f32 = jnp.float32

    # Fused LLM classification head: logits = pooled @ head_w + head_b
    logits = jnp.dot(pooled_ref[...].astype(bf16), hw_ref[...],
                     preferred_element_type=f32) + hb_ref[...]

    # FFN layer 0: ReLU -> Dropout(identity) -> Linear(LLM_dim, H)
    h = jnp.maximum(logits, 0.0)
    h = jnp.dot(h.astype(bf16), w1_ref[...], preferred_element_type=f32) + b1_ref[...]

    # FFN layer 1: ReLU -> Dropout(identity) -> Linear(H, H)
    h = jnp.maximum(h, 0.0)
    h = jnp.dot(h.astype(bf16), w2_ref[...], preferred_element_type=f32) + b2_ref[...]

    # FFN layer 2 (last): ReLU -> Dropout(identity) -> Linear(H, OUT)
    h = jnp.maximum(h, 0.0)
    h = jnp.dot(h.astype(bf16), w3_ref[...], preferred_element_type=f32) + b3_ref[...]

    # output_activation == 'exp' (matches reference exactly; 0.1-scale
    # weights keep pre-activations small so no max-subtraction is needed).
    out = jnp.exp(h)

    # norm_range normalization over columns [50, 550): lane-aligned 640-wide
    # prefix window, (1, 640) iota mask, masked reduce, then a single per-row
    # reciprocal-multiply instead of a 1801-wide divide.
    win = out[:, :NORM_WIN]
    col = jax.lax.broadcasted_iota(jnp.int32, (1, NORM_WIN), 1)
    in_range = (col >= NORM_RANGE[0]) & (col < NORM_RANGE[1])
    norm_sum = jnp.sum(jnp.where(in_range, win, 0.0), axis=1, keepdims=True)
    o_ref[...] = out * pl.reciprocal(norm_sum)


# ---------------------------------------------------------------------------
# Batch tiling: >=2 grid steps whenever round_up(B,8) >= 16 (so the
# "parallel" axis can shard across both v7x TensorCores), tiles near 512
# rows for big batches (HBM-roofline output DMAs on v5e/v6e), minimal
# padding waste (<= n_tiles*8 rows).
# ---------------------------------------------------------------------------
def _pick_batch_tiling(B):
    B8 = _round_up(B, 8)
    if B8 < 16:
        return B8, 1
    n_tiles = max(2, pl.cdiv(B8, 512))
    TB = _round_up(pl.cdiv(B8, n_tiles), 8)
    return TB, n_tiles


# ---------------------------------------------------------------------------
# Wrapper.  Expects weight matrices already cast to bf16 at model init
# (biases stay f32, added post-MXU).  Output is written directly at the
# true 1801-column width (no post-kernel slice copy).
# ---------------------------------------------------------------------------
def smile2spec_forward(pooled, head_w, head_b, w1, b1, w2, b2, w3, b3):
    B, E = pooled.shape
    LLM_DIM = head_w.shape[1]
    H = w1.shape[1]
    OUT = w3.shape[1]

    TB, n_tiles = _pick_batch_tiling(B)
    B_pad = TB * n_tiles
    if B_pad != B:
        pooled = jnp.pad(pooled, ((0, B_pad - B), (0, 0)))

    # Weights/biases: one full-array block, invariant across grid steps.
    full = lambda shape: pl.BlockSpec(shape, lambda i: (0,) * len(shape))

    out = pl.pallas_call(
        _smile2spec_kernel,
        out_shape=jax.ShapeDtypeStruct((B_pad, OUT), jnp.float32),
        grid=(n_tiles,),
        in_specs=[
            pl.BlockSpec((TB, E), lambda i: (i, 0)),       # pooled (batch-tiled)
            full((E, LLM_DIM)), full((1, LLM_DIM)),        # LLM head
            full((LLM_DIM, H)), full((1, H)),              # ffn layer 0
            full((H, H)), full((1, H)),                    # ffn layer 1
            full((H, OUT)), full((1, OUT)),                # ffn layer 2
        ],
        out_specs=pl.BlockSpec((TB, OUT), lambda i: (i, 0)),
        compiler_params=pltpu.CompilerParams(
            dimension_semantics=("parallel",),
            vmem_limit_bytes=48 * 1024 * 1024),
    )(pooled, head_w, head_b, w1, b1, w2, b2, w3, b3)

    return out if B_pad == B else out[:B]


# ---------------------------------------------------------------------------
# Synthetic deterministic "LLM" stand-in (plain JAX glue up to the pooled
# features).  The classification-head matmul itself is fused into the Pallas
# kernel above.
# TODO(synk): AutoModelForSequenceClassification transformer not translated;
# replaced by embedding lookup + masked mean-pool producing pooled features.
# ---------------------------------------------------------------------------
def llm_pooled_features(input_ids, attention_mask, emb):
    x = emb[input_ids]                                   # (B, S, E)
    m = attention_mask.astype(jnp.float32)[..., None]    # (B, S, 1)
    return jnp.sum(x * m, axis=1) / jnp.maximum(jnp.sum(m, axis=1), 1.0)


# ---------------------------------------------------------------------------
# Pure-JAX reference (same bf16-operand / f32-accumulate arithmetic).
# ---------------------------------------------------------------------------
def reference_forward(pooled, head_w, head_b, w1, b1, w2, b2, w3, b3):
    def mm(a, w):
        return jnp.dot(a.astype(jnp.bfloat16), w.astype(jnp.bfloat16),
                       preferred_element_type=jnp.float32)

    logits = mm(pooled, head_w) + head_b
    h = mm(jnp.maximum(logits, 0.0), w1) + b1
    h = mm(jnp.maximum(h, 0.0), w2) + b2
    h = mm(jnp.maximum(h, 0.0), w3) + b3
    out = jnp.exp(h)
    s = jnp.sum(out[:, NORM_RANGE[0]:NORM_RANGE[1]], axis=1, keepdims=True)
    return out / s


if __name__ == "__main__":
    key = jax.random.PRNGKey(0)
    keys = jax.random.split(key, 10)

    # Synthetic inputs (what the PyTorch forward receives).
    input_ids = jax.random.randint(keys[0], (BATCH, SEQ), 0, VOCAB)
    attention_mask = jnp.ones((BATCH, SEQ), dtype=jnp.int32)

    # Deterministic synthetic parameters (f32 master copies).
    E = EMB_DIM
    emb = 0.1 * jax.random.normal(keys[1], (VOCAB, E), dtype=jnp.float32)
    head_w = 0.1 * jax.random.normal(keys[2], (E, LLM_LOGITS_DIM), dtype=jnp.float32)
    head_b = 0.01 * jax.random.normal(keys[3], (1, LLM_LOGITS_DIM), dtype=jnp.float32)

    H, OUT = FFN_HIDDEN_DIM, FFN_OUTPUT_DIM
    w1 = 0.1 * jax.random.normal(keys[4], (LLM_LOGITS_DIM, H), dtype=jnp.float32)
    b1 = 0.01 * jax.random.normal(keys[5], (1, H), dtype=jnp.float32)
    w2 = 0.1 * jax.random.normal(keys[6], (H, H), dtype=jnp.float32)
    b2 = 0.01 * jax.random.normal(keys[7], (1, H), dtype=jnp.float32)
    w3 = 0.1 * jax.random.normal(keys[8], (H, OUT), dtype=jnp.float32)
    b3 = 0.01 * jax.random.normal(keys[9], (1, OUT), dtype=jnp.float32)

    # "Model init": cast weight matrices to bf16 once (halves weight DMA;
    # f32 accumulation in the MXU).  Biases stay f32.
    head_w_b = head_w.astype(jnp.bfloat16)
    w1_b = w1.astype(jnp.bfloat16)
    w2_b = w2.astype(jnp.bfloat16)
    w3_b = w3.astype(jnp.bfloat16)

    # JAX glue up to pooled features, then the fused Pallas kernel
    # (LLM head matmul + FFN + exp + range-normalize).
    pooled = llm_pooled_features(input_ids, attention_mask, emb)
    out = smile2spec_forward(pooled, head_w_b, head_b, w1_b, b1,
                             w2_b, b2, w3_b, b3)
    out = jax.block_until_ready(out)

    ref = reference_forward(pooled, head_w, head_b, w1, b1, w2, b2, w3, b3)
    assert out.shape == (BATCH, FFN_OUTPUT_DIM)
    assert bool(jnp.allclose(out, ref, rtol=2e-3, atol=1e-6))

    print("KERNEL_OK")
</pallas_src>

<mosaic_0001>
module attributes {stable_mosaic.version = 11 : i64} {
  func.func @_smile2spec_kernel(%arg0: i32, %arg1: memref<8x16xf32, #tpu.memory_space<vmem>>, %arg2: memref<16x32xbf16, #tpu.memory_space<vmem>>, %arg3: memref<1x32xf32, #tpu.memory_space<vmem>>, %arg4: memref<32x32xbf16, #tpu.memory_space<vmem>>, %arg5: memref<1x32xf32, #tpu.memory_space<vmem>>, %arg6: memref<32x32xbf16, #tpu.memory_space<vmem>>, %arg7: memref<1x32xf32, #tpu.memory_space<vmem>>, %arg8: memref<32x1801xbf16, #tpu.memory_space<vmem>>, %arg9: memref<1x1801xf32, #tpu.memory_space<vmem>>, %arg10: memref<8x1801xf32, #tpu.memory_space<vmem>>) attributes {dimension_semantics = [#tpu.dimension_semantics<parallel>], iteration_bounds = array<i64: 1>, scalar_prefetch = 0 : i64, scratch_operands = 0 : i64, tpu.core_type = #tpu.core_type<tc>, window_params = [{transform_indices = @transform_0, window_bounds = array<i64: 8, 16>}, {pipeline_mode = #tpu.pipeline_mode<synchronous>, transform_indices = @transform_1, window_bounds = array<i64: 16, 32>}, {pipeline_mode = #tpu.pipeline_mode<synchronous>, transform_indices = @transform_2, window_bounds = array<i64: 1, 32>}, {pipeline_mode = #tpu.pipeline_mode<synchronous>, transform_indices = @transform_3, window_bounds = array<i64: 32, 32>}, {pipeline_mode = #tpu.pipeline_mode<synchronous>, transform_indices = @transform_4, window_bounds = array<i64: 1, 32>}, {pipeline_mode = #tpu.pipeline_mode<synchronous>, transform_indices = @transform_5, window_bounds = array<i64: 32, 32>}, {pipeline_mode = #tpu.pipeline_mode<synchronous>, transform_indices = @transform_6, window_bounds = array<i64: 1, 32>}, {pipeline_mode = #tpu.pipeline_mode<synchronous>, transform_indices = @transform_7, window_bounds = array<i64: 32, 1801>}, {pipeline_mode = #tpu.pipeline_mode<synchronous>, transform_indices = @transform_8, window_bounds = array<i64: 1, 1801>}, {transform_indices = @transform_9, window_bounds = array<i64: 8, 1801>}]} {
    %c0 = arith.constant 0 : index
    %c0_0 = arith.constant 0 : index
    %0 = vector.load %arg1[%c0, %c0_0] : memref<8x16xf32, #tpu.memory_space<vmem>>, vector<8x16xf32>
    %1 = arith.truncf %0 : vector<8x16xf32> to vector<8x16xbf16>
    %c0_1 = arith.constant 0 : index
    %c0_2 = arith.constant 0 : index
    %2 = vector.load %arg2[%c0_1, %c0_2] : memref<16x32xbf16, #tpu.memory_space<vmem>>, vector<16x32xbf16>
    %cst = arith.constant dense<0.000000e+00> : vector<8x32xf32>
    %3 = tpu.matmul %1, %2, %cst {dimension_numbers = #tpu.dot_dimension_numbers<[1], [0], [0], [1], [0, 0, 1, 1], [], []>} : vector<8x16xbf16>, vector<16x32xbf16>, vector<8x32xf32> -> vector<8x32xf32>
    %c0_3 = arith.constant 0 : index
    %c0_4 = arith.constant 0 : index
    %4 = vector.load %arg3[%c0_3, %c0_4] : memref<1x32xf32, #tpu.memory_space<vmem>>, vector<1x32xf32>
    %5 = vector.broadcast %4 : vector<1x32xf32> to vector<8x32xf32>
    %6 = arith.addf %3, %5 : vector<8x32xf32>
    %cst_5 = arith.constant 0.000000e+00 : f32
    %7 = vector.broadcast %cst_5 : f32 to vector<8x32xf32>
    %8 = arith.maximumf %6, %7 : vector<8x32xf32>
    %9 = arith.truncf %8 : vector<8x32xf32> to vector<8x32xbf16>
    %c0_6 = arith.constant 0 : index
    %c0_7 = arith.constant 0 : index
    %10 = vector.load %arg4[%c0_6, %c0_7] : memref<32x32xbf16, #tpu.memory_space<vmem>>, vector<32x32xbf16>
    %cst_8 = arith.constant dense<0.000000e+00> : vector<8x32xf32>
    %11 = tpu.matmul %9, %10, %cst_8 {dimension_numbers = #tpu.dot_dimension_numbers<[1], [0], [0], [1], [0, 0, 1, 1], [], []>} : vector<8x32xbf16>, vector<32x32xbf16>, vector<8x32xf32> -> vector<8x32xf32>
    %c0_9 = arith.constant 0 : index
    %c0_10 = arith.constant 0 : index
    %12 = vector.load %arg5[%c0_9, %c0_10] : memref<1x32xf32, #tpu.memory_space<vmem>>, vector<1x32xf32>
    %13 = vector.broadcast %12 : vector<1x32xf32> to vector<8x32xf32>
    %14 = arith.addf %11, %13 : vector<8x32xf32>
    %cst_11 = arith.constant 0.000000e+00 : f32
    %15 = vector.broadcast %cst_11 : f32 to vector<8x32xf32>
    %16 = arith.maximumf %14, %15 : vector<8x32xf32>
    %17 = arith.truncf %16 : vector<8x32xf32> to vector<8x32xbf16>
    %c0_12 = arith.constant 0 : index
    %c0_13 = arith.constant 0 : index
    %18 = vector.load %arg6[%c0_12, %c0_13] : memref<32x32xbf16, #tpu.memory_space<vmem>>, vector<32x32xbf16>
    %cst_14 = arith.constant dense<0.000000e+00> : vector<8x32xf32>
    %19 = tpu.matmul %17, %18, %cst_14 {dimension_numbers = #tpu.dot_dimension_numbers<[1], [0], [0], [1], [0, 0, 1, 1], [], []>} : vector<8x32xbf16>, vector<32x32xbf16>, vector<8x32xf32> -> vector<8x32xf32>
    %c0_15 = arith.constant 0 : index
    %c0_16 = arith.constant 0 : index
    %20 = vector.load %arg7[%c0_15, %c0_16] : memref<1x32xf32, #tpu.memory_space<vmem>>, vector<1x32xf32>
    %21 = vector.broadcast %20 : vector<1x32xf32> to vector<8x32xf32>
    %22 = arith.addf %19, %21 : vector<8x32xf32>
    %cst_17 = arith.constant 0.000000e+00 : f32
    %23 = vector.broadcast %cst_17 : f32 to vector<8x32xf32>
    %24 = arith.maximumf %22, %23 : vector<8x32xf32>
    %25 = arith.truncf %24 : vector<8x32xf32> to vector<8x32xbf16>
    %c0_18 = arith.constant 0 : index
    %c0_19 = arith.constant 0 : index
    %26 = vector.load %arg8[%c0_18, %c0_19] : memref<32x1801xbf16, #tpu.memory_space<vmem>>, vector<32x1801xbf16>
    %cst_20 = arith.constant dense<0.000000e+00> : vector<8x1801xf32>
    %27 = tpu.matmul %25, %26, %cst_20 {dimension_numbers = #tpu.dot_dimension_numbers<[1], [0], [0], [1], [0, 0, 1, 1], [], []>} : vector<8x32xbf16>, vector<32x1801xbf16>, vector<8x1801xf32> -> vector<8x1801xf32>
    %c0_21 = arith.constant 0 : index
    %c0_22 = arith.constant 0 : index
    %28 = vector.load %arg9[%c0_21, %c0_22] : memref<1x1801xf32, #tpu.memory_space<vmem>>, vector<1x1801xf32>
    %29 = vector.broadcast %28 : vector<1x1801xf32> to vector<8x1801xf32>
    %30 = arith.addf %27, %29 : vector<8x1801xf32>
    %31 = math.exp %30 : vector<8x1801xf32>
    %32 = vector.extract_strided_slice %31 {offsets = [0, 0], sizes = [8, 640], strides = [1, 1]} : vector<8x1801xf32> to vector<8x640xf32>
    %33 = tpu.iota {dimensions = array<i32: 1>} : vector<1x640xi32>
    %c50_i32 = arith.constant 50 : i32
    %34 = vector.broadcast %c50_i32 : i32 to vector<1x640xi32>
    %35 = arith.cmpi sge, %33, %34 : vector<1x640xi32>
    %c550_i32 = arith.constant 550 : i32
    %36 = vector.broadcast %c550_i32 : i32 to vector<1x640xi32>
    %37 = arith.cmpi slt, %33, %36 : vector<1x640xi32>
    %38 = arith.andi %35, %37 : vector<1x640xi1>
    %cst_23 = arith.constant 0.000000e+00 : f32
    %39 = vector.shape_cast %38 : vector<1x640xi1> to vector<1x640xi1>
    %40 = vector.broadcast %39 : vector<1x640xi1> to vector<8x640xi1>
    %41 = vector.broadcast %cst_23 : f32 to vector<8x640xf32>
    %42 = arith.select %40, %32, %41 : vector<8x640xi1>, vector<8x640xf32>
    %cst_24 = arith.constant dense<0.000000e+00> : vector<8xf32>
    %43 = vector.multi_reduction <add>, %42, %cst_24 [1] : vector<8x640xf32> to vector<8xf32>
    %44 = vector.shape_cast %43 : vector<8xf32> to vector<8x1xf32>
    %45 = tpu.reciprocal %44 : vector<8x1xf32> -> vector<8x1xf32>
    %46 = vector.broadcast %45 : vector<8x1xf32> to vector<8x1801xf32>
    %47 = arith.mulf %31, %46 : vector<8x1801xf32>
    %c0_25 = arith.constant 0 : index
    %c0_26 = arith.constant 0 : index
    %48 = vector.load %arg10[%c0_25, %c0_26] : memref<8x1801xf32, #tpu.memory_space<vmem>>, vector<8x1801xf32>
    tpu.vector_store %arg10[%c0_25, %c0_26], %47 {strides = array<i32>} : memref<8x1801xf32, #tpu.memory_space<vmem>>, vector<8x1801xf32>,
    return
  }
  func.func @transform_0(%arg0: i32) -> (i32, i32) {
    %c0_i32 = arith.constant 0 : i32
    %c0_i32_0 = arith.constant 0 : i32
    return %arg0, %c0_i32 : i32, i32
  }
  func.func @transform_1(%arg0: i32) -> (i32, i32) {
    %c0_i32 = arith.constant 0 : i32
    %c0_i32_0 = arith.constant 0 : i32
    %c0_i32_1 = arith.constant 0 : i32
    return %c0_i32, %c0_i32_0 : i32, i32
  }
  func.func @transform_2(%arg0: i32) -> (i32, i32) {
    %c0_i32 = arith.constant 0 : i32
    %c0_i32_0 = arith.constant 0 : i32
    %c0_i32_1 = arith.constant 0 : i32
    return %c0_i32, %c0_i32_0 : i32, i32
  }
  func.func @transform_3(%arg0: i32) -> (i32, i32) {
    %c0_i32 = arith.constant 0 : i32
    %c0_i32_0 = arith.constant 0 : i32
    %c0_i32_1 = arith.constant 0 : i32
    return %c0_i32, %c0_i32_0 : i32, i32
  }
  func.func @transform_4(%arg0: i32) -> (i32, i32) {
    %c0_i32 = arith.constant 0 : i32
    %c0_i32_0 = arith.constant 0 : i32
    %c0_i32_1 = arith.constant 0 : i32
    return %c0_i32, %c0_i32_0 : i32, i32
  }
  func.func @transform_5(%arg0: i32) -> (i32, i32) {
    %c0_i32 = arith.constant 0 : i32
    %c0_i32_0 = arith.constant 0 : i32
    %c0_i32_1 = arith.constant 0 : i32
    return %c0_i32, %c0_i32_0 : i32, i32
  }
  func.func @transform_6(%arg0: i32) -> (i32, i32) {
    %c0_i32 = arith.constant 0 : i32
    %c0_i32_0 = arith.constant 0 : i32
    %c0_i32_1 = arith.constant 0 : i32
    return %c0_i32, %c0_i32_0 : i32, i32
  }
  func.func @transform_7(%arg0: i32) -> (i32, i32) {
    %c0_i32 = arith.constant 0 : i32
    %c0_i32_0 = arith.constant 0 : i32
    %c0_i32_1 = arith.constant 0 : i32
    return %c0_i32, %c0_i32_0 : i32, i32
  }
  func.func @transform_8(%arg0: i32) -> (i32, i32) {
    %c0_i32 = arith.constant 0 : i32
    %c0_i32_0 = arith.constant 0 : i32
    %c0_i32_1 = arith.constant 0 : i32
    return %c0_i32, %c0_i32_0 : i32, i32
  }
  func.func @transform_9(%arg0: i32) -> (i32, i32) {
    %c0_i32 = arith.constant 0 : i32
    %c0_i32_0 = arith.constant 0 : i32
    return %arg0, %c0_i32 : i32, i32
  }
}

</mosaic_0001>

<llo_original>
// kernel: tpu_custom_call.1
$region0: #{tpu_custom_call.1}
  #allocation0 [shape = 'u32[]', space=smem, size = 0x4, offset = 0x4, fixed_abs, tag = 'smem constant byte address 0x4 - core index']
  #allocation1 [shape = 'u32[144,128]{1,0:T(1,128)}', space=vmem, size = 0x12000, scoped, tag = 'internal scratch']
  %s0 = inlined_call_operand.hbm [shape: f32[8,16], index: 0, kind: input, shape index: {}]
  %s1 = inlined_call_operand.hbm [shape: bf16[16,32], index: 1, kind: input, shape index: {}]
  %s2 = inlined_call_operand.vmem [shape: f32[1,32], index: 2, kind: input, shape index: {}]
  %s3 = inlined_call_operand.hbm [shape: bf16[32,32], index: 3, kind: input, shape index: {}]
  %s4 = inlined_call_operand.vmem [shape: f32[1,32], index: 4, kind: input, shape index: {}]
  %s5 = inlined_call_operand.vmem [shape: bf16[32,32], index: 5, kind: input, shape index: {}]
  %s6 = inlined_call_operand.vmem [shape: f32[1,32], index: 6, kind: input, shape index: {}]
  %s7 = inlined_call_operand.hbm [shape: bf16[32,1801], index: 7, kind: input, shape index: {}]
  %s8 = inlined_call_operand.hbm [shape: f32[1,1801], index: 8, kind: input, shape index: {}]
  %s9 = inlined_call_operand.hbm [shape: f32[8,1801], index: 9, kind: output, shape index: {}]
  %s10 = sld [smem:[#allocation0]]
  $region66: #{tpu_custom_call.1} parent=0
    _
  %s12 = ssub.s32 1, %s10
  %s13 = scalar_select 0, %s12, %s10
  $region1: #{tpu_custom_call.1} parent=0
    #allocation2 [shape = 'u8[4096]{0}', space=vmem, size = 0x1000, scoped, tag = 'input window, operand 0, single buffered']
    #allocation3 [shape = 's32[1]{0}', space=sflag, size = 0x4, scoped, tag = 'scoped memory for tpu_custom_call.1']
    #allocation4 [shape = 's32[1]{0}', space=sflag, size = 0x4, scoped, tag = 'scoped memory for tpu_custom_call.1']
    #allocation5 [shape = 'u8[4096]{0}', space=vmem, size = 0x1000, scoped, tag = 'input window, operand 1, single buffered']
    #allocation6 [shape = 's32[1]{0}', space=sflag, size = 0x4, scoped, tag = 'scoped memory for tpu_custom_call.1']
    #allocation7 [shape = 'u8[8192]{0}', space=vmem, size = 0x2000, scoped, tag = 'input window, operand 3, single buffered']
    #allocation8 [shape = 'u8[122880]{0}', space=vmem, size = 0x1e000, scoped, tag = 'input window, operand 7, single buffered']
    #allocation9 [shape = 's32[1]{0}', space=sflag, size = 0x4, scoped, tag = 'scoped memory for tpu_custom_call.1']
    #allocation10 [shape = 'u8[7680]{0}', space=vmem, size = 0x2000, scoped, tag = 'input window, operand 8, single buffered']
    #allocation11 [shape = 'u8[61440]{0}', space=vmem, size = 0xf000, scoped, tag = 'output window, operand 0, single buffered']
    %14 = vsyncpa [#allocation3], 0
    %15 = vsyncpa [#allocation6], 0
    %16 = vsyncpa [#allocation9], 0
    %17 = vsyncpa [#allocation4], 0
    // Predicated region
    $region2: #{tpu_custom_call.1} parent=1 // pred_check
      _
    $region3: #{tpu_custom_call.1} parent=1 // pred_check_branch
      %19 = sbr.rel (0) target = $region5
    $region4: #{tpu_custom_call.1} parent=1 // pred_region
      %s21 = ssub.s32 128, 128
      %22 = vsyncadd [#allocation3], %s21
      %s24 = sshll.u32 [#allocation2], 4
      %s25 = int_to_ptr.vmem [resolvable:$true] %s24
      %27 = dma.hbm_to_vmem [thread:$0]  %s0, 128, %s25, [#allocation3]
    $region5: #{tpu_custom_call.1} parent=1 // pred_fallthru
      _
    // Predicated region
    $region6: #{tpu_custom_call.1} parent=1 // pred_check
      _
    $region7: #{tpu_custom_call.1} parent=1 // pred_check_branch
      %29 = sbr.rel (0) target = $region9
    $region8: #{tpu_custom_call.1} parent=1 // pred_region
      %s31 = ssub.s32 128, 128
      %32 = vsyncadd [#allocation6], %s31
      %s33 = sshll.u32 [#allocation5], 4
      %s34 = int_to_ptr.vmem [resolvable:$true] %s33
      %39 = dma.hbm_to_vmem [thread:$0]  %s1, 128, %s34, [#allocation6], 64, 64, 4
    $region9: #{tpu_custom_call.1} parent=1 // pred_fallthru
      _
    // Predicated region
    $region10: #{tpu_custom_call.1} parent=1 // pred_check
      _
    $region11: #{tpu_custom_call.1} parent=1 // pred_check_branch
      %41 = sbr.rel (0) target = $region13
    $region12: #{tpu_custom_call.1} parent=1 // pred_region
      _
    $region13: #{tpu_custom_call.1} parent=1 // pred_fallthru
      _
    // Predicated region
    $region14: #{tpu_custom_call.1} parent=1 // pred_check
      _
    $region15: #{tpu_custom_call.1} parent=1 // pred_check_branch
      %43 = sbr.rel (0) target = $region17
    $region16: #{tpu_custom_call.1} parent=1 // pred_region
      %s45 = ssub.s32 256, 256
      %46 = vsyncadd [#allocation6], %s45
      %s47 = sshll.u32 [#allocation7], 4
      %s48 = int_to_ptr.vmem [resolvable:$true] %s47
      %53 = dma.hbm_to_vmem [thread:$0]  %s3, 256, %s48, [#allocation6], 64, 64, 4
    $region17: #{tpu_custom_call.1} parent=1 // pred_fallthru
      _
    // Predicated region
    $region18: #{tpu_custom_call.1} parent=1 // pred_check
      _
    $region19: #{tpu_custom_call.1} parent=1 // pred_check_branch
      %55 = sbr.rel (0) target = $region21
    $region20: #{tpu_custom_call.1} parent=1 // pred_region
      _
    $region21: #{tpu_custom_call.1} parent=1 // pred_fallthru
      _
    // Predicated region
    $region22: #{tpu_custom_call.1} parent=1 // pred_check
      _
    $region23: #{tpu_custom_call.1} parent=1 // pred_check_branch
      %57 = sbr.rel (0) target = $region25
    $region24: #{tpu_custom_call.1} parent=1 // pred_region
      _
    $region25: #{tpu_custom_call.1} parent=1 // pred_fallthru
      _
    // Predicated region
    $region26: #{tpu_custom_call.1} parent=1 // pred_check
      _
    $region27: #{tpu_custom_call.1} parent=1 // pred_check_branch
      %59 = sbr.rel (0) target = $region29
    $region28: #{tpu_custom_call.1} parent=1 // pred_region
      _
    $region29: #{tpu_custom_call.1} parent=1 // pred_fallthru
      _
    // Predicated region
    $region30: #{tpu_custom_call.1} parent=1 // pred_check
      _
    $region31: #{tpu_custom_call.1} parent=1 // pred_check_branch
      %61 = sbr.rel (0) target = $region33
    $region32: #{tpu_custom_call.1} parent=1 // pred_region
      %s63 = ssub.s32 3840, 3840
      %64 = vsyncadd [#allocation9], %s63
      %s65 = sshll.u32 [#allocation8], 4
      %s66 = int_to_ptr.vmem [resolvable:$true] %s65
      %71 = dma.hbm_to_vmem [thread:$0]  %s7, 3840, %s66, [#allocation9], 960, 960, 60
    $region33: #{tpu_custom_call.1} parent=1 // pred_fallthru
      _
    // Predicated region
    $region34: #{tpu_custom_call.1} parent=1 // pred_check
      _
    $region35: #{tpu_custom_call.1} parent=1 // pred_check_branch
      %73 = sbr.rel (0) target = $region37
    $region36: #{tpu_custom_call.1} parent=1 // pred_region
      %s75 = ssub.s32 240, 240
      %76 = vsyncadd [#allocation9], %s75
      %s78 = sshll.u32 [#allocation10], 4
      %s79 = int_to_ptr.vmem [resolvable:$true] %s78
      %81 = dma.hbm_to_vmem [thread:$0]  %s8, 240, %s79, [#allocation9]
    $region37: #{tpu_custom_call.1} parent=1 // pred_fallthru
      _
    // Predicated region
    $region38: #{tpu_custom_call.1} parent=1 // pred_check
      _
    $region39: #{tpu_custom_call.1} parent=1 // pred_check_branch
      %83 = sbr.rel (0) target = $region41
    $region40: #{tpu_custom_call.1} parent=1 // pred_region
      %84 = dma.done [#allocation3], 128
    $region41: #{tpu_custom_call.1} parent=1 // pred_fallthru
      _
    // Predicated region
    $region42: #{tpu_custom_call.1} parent=1 // pred_check
      _
    $region43: #{tpu_custom_call.1} parent=1 // pred_check_branch
      %86 = sbr.rel (0) target = $region45
    $region44: #{tpu_custom_call.1} parent=1 // pred_region
      %87 = dma.done [#allocation6], 128
    $region45: #{tpu_custom_call.1} parent=1 // pred_fallthru
      _
    // Predicated region
    $region46: #{tpu_custom_call.1} parent=1 // pred_check
      _
    $region47: #{tpu_custom_call.1} parent=1 // pred_check_branch
      %89 = sbr.rel (0) target = $region49
    $region48: #{tpu_custom_call.1} parent=1 // pred_region
      %90 = dma.done [#allocation6], 256
    $region49: #{tpu_custom_call.1} parent=1 // pred_fallthru
      _
    // Predicated region
    $region50: #{tpu_custom_call.1} parent=1 // pred_check
      _
    $region51: #{tpu_custom_call.1} parent=1 // pred_check_branch
      %92 = sbr.rel (0) target = $region53
    $region52: #{tpu_custom_call.1} parent=1 // pred_region
      %93 = dma.done [#allocation9], 3840
    $region53: #{tpu_custom_call.1} parent=1 // pred_fallthru
      _
    // Predicated region
    $region54: #{tpu_custom_call.1} parent=1 // pred_check
      _
    $region55: #{tpu_custom_call.1} parent=1 // pred_check_branch
      %95 = sbr.rel (0) target = $region57
    $region56: #{tpu_custom_call.1} parent=1 // pred_region
      %96 = dma.done [#allocation9], 240
    $region57: #{tpu_custom_call.1} parent=1 // pred_fallthru
      _
    %v98 = vld [vmem:[#allocation2] sm:$0xff]
    %v99 = vpack.c.bf16 %v98, %v98
    %v100 = vld [vmem:[#allocation5] sm:$0xf]
    %v101 = vld [vmem:[#allocation5 + $0x4] sm:$0xf]
    %v102 = vld [vmem:[%s2] sm:$0x1]
    %v104 = vlaneseq
    %v105 = vshrl.u32 %v104, 7
    %v106 = vsub.s32 0, %v105
    %v107 = vrot.slane %v102, %v106
    %v111 = vunpack.c.l.b16 %v100
    %v112 = vunpack.c.l.b16 %v101
    %v113 = vpack.c.b16 %v112, %v111
    %vm115 = vcmask 130048
    %v117 = vsel %vm115, %v99, 0
    %119 = vmatprep.subr.bf16.mxu0 0
    %120 = vmatpush1.bf16.msra.mxu0 %v113
    %121 = vmatprep.subr.bf16.mxu0 0
    %122 = vmatpush1.bf16.msra.mxu0 0
    %123 = vmatprep.subr.bf16.mxu0 0
    %124 = vmatpush1.bf16.msra.mxu0 0
    %125 = vmatprep.subr.bf16.mxu0 0
    %126 = vmatpush1.bf16.msra.mxu0 0
    %127 = vmatprep.subr.bf16.mxu0 0
    %128 = vmatpush1.bf16.msra.mxu0 0
    %129 = vmatprep.subr.bf16.mxu0 0
    %130 = vmatpush1.bf16.msra.mxu0 0
    %131 = vmatprep.subr.bf16.mxu0 0
    %132 = vmatpush1.bf16.msra.mxu0 0
    %133 = vmatprep.subr.bf16.mxu0 0
    %134 = vmatpush1.bf16.msra.mxu0 0
    %135 = vmatprep.subr.bf16.mxu0 0
    %136 = vmatpush1.bf16.msra.mxu0 0
    %137 = vmatprep.subr.bf16.mxu0 0
    %138 = vmatpush1.bf16.msra.mxu0 0
    %139 = vmatprep.subr.bf16.mxu0 0
    %140 = vmatpush1.bf16.msra.mxu0 0
    %141 = vmatprep.subr.bf16.mxu0 0
    %142 = vmatpush1.bf16.msra.mxu0 0
    %143 = vmatprep.subr.bf16.mxu0 0
    %144 = vmatpush1.bf16.msra.mxu0 0
    %145 = vmatprep.subr.bf16.mxu0 0
    %146 = vmatpush1.bf16.msra.mxu0 0
    %147 = vmatprep.subr.bf16.mxu0 0
    %148 = vmatpush1.bf16.msra.mxu0 0
    %149 = vmatprep.subr.bf16.mxu0 0
    %150 = vmatpush1.bf16.msra.mxu0 0
    %151 = vmatprep.mubr.bf16.mxu0 0
    %152 = vmatmul.mubr.bf16.gmra.mrb[0].mxu0 %v117
    %v153 = vpop.f32.mrb[0].mxu0
    %v154 = vadd.f32 %v107, %v153
    %v155 = vpop.f32.mrb[0].mxu0
    %v156 = vpop.f32.mrb[0].mxu0
    %v157 = vpop.f32.mrb[0].mxu0
    %158 = vdwg.mxu0
    %v159 = vmax.f32 %v154, 0.0
    %v160 = vpack.c.bf16 %v159, %v159
    %v161 = vld [vmem:[#allocation7] sm:$0xf]
    %v162 = vld [vmem:[#allocation7 + $0x4] sm:$0xf]
    %v163 = vld [vmem:[#allocation7 + $0x8] sm:$0xf]
    %v164 = vld [vmem:[#allocation7 + $0xc] sm:$0xf]
    %v165 = vld [vmem:[%s4] sm:$0x1]
    %v167 = vlaneseq
    %v168 = vshrl.u32 %v167, 7
    %v169 = vsub.s32 0, %v168
    %v170 = vrot.slane %v165, %v169
    %v176 = vunpack.c.l.b16 %v161
    %v177 = vunpack.c.l.b16 %v162
    %v178 = vunpack.c.l.b16 %v163
    %v179 = vunpack.c.l.b16 %v164
    %v180 = vpack.c.b16 %v177, %v176
    %v181 = vpack.c.b16 %v179, %v178
    %vm184 = vcmask 261120
    %v186 = vsel %vm184, %v160, 0
    %188 = vmatprep.subr.bf16.mxu0 0
    %189 = vmatpush1.bf16.msra.mxu0 %v180
    %190 = vmatprep.subr.bf16.mxu0 0
    %191 = vmatpush1.bf16.msra.mxu0 %v181
    %192 = vmatprep.subr.bf16.mxu0 0
    %193 = vmatpush1.bf16.msra.mxu0 0
    %194 = vmatprep.subr.bf16.mxu0 0
    %195 = vmatpush1.bf16.msra.mxu0 0
    %196 = vmatprep.subr.bf16.mxu0 0
    %197 = vmatpush1.bf16.msra.mxu0 0
    %198 = vmatprep.subr.bf16.mxu0 0
    %199 = vmatpush1.bf16.msra.mxu0 0
    %200 = vmatprep.subr.bf16.mxu0 0
    %201 = vmatpush1.bf16.msra.mxu0 0
    %202 = vmatprep.subr.bf16.mxu0 0
    %203 = vmatpush1.bf16.msra.mxu0 0
    %204 = vmatprep.subr.bf16.mxu0 0
    %205 = vmatpush1.bf16.msra.mxu0 0
    %206 = vmatprep.subr.bf16.mxu0 0
    %207 = vmatpush1.bf16.msra.mxu0 0
    %208 = vmatprep.subr.bf16.mxu0 0
    %209 = vmatpush1.bf16.msra.mxu0 0
    %210 = vmatprep.subr.bf16.mxu0 0
    %211 = vmatpush1.bf16.msra.mxu0 0
    %212 = vmatprep.subr.bf16.mxu0 0
    %213 = vmatpush1.bf16.msra.mxu0 0
    %214 = vmatprep.subr.bf16.mxu0 0
    %215 = vmatpush1.bf16.msra.mxu0 0
    %216 = vmatprep.subr.bf16.mxu0 0
    %217 = vmatpush1.bf16.msra.mxu0 0
    %218 = vmatprep.subr.bf16.mxu0 0
    %219 = vmatpush1.bf16.msra.mxu0 0
    %220 = vmatprep.mubr.bf16.mxu0 0
    %221 = vmatmul.mubr.bf16.gmra.mrb[0].mxu0 %v186
    %v222 = vpop.f32.mrb[0].mxu0
    %v223 = vadd.f32 %v170, %v222
    %v224 = vpop.f32.mrb[0].mxu0
    %v225 = vpop.f32.mrb[0].mxu0
    %v226 = vpop.f32.mrb[0].mxu0
    %227 = vdwg.mxu0
    %v228 = vmax.f32 %v223, 0.0
    %v229 = vpack.c.bf16 %v228, %v228
    %v230 = vld [vmem:[%s5] sm:$0xf]
    %v231 = vld [vmem:[%s5 + $0x4] sm:$0xf]
    %v232 = vld [vmem:[%s5 + $0x8] sm:$0xf]
    %v233 = vld [vmem:[%s5 + $0xc] sm:$0xf]
    %v234 = vld [vmem:[%s6] sm:$0x1]
    %v236 = vlaneseq
    %v237 = vshrl.u32 %v236, 7
    %v238 = vsub.s32 0, %v237
    %v239 = vrot.slane %v234, %v238
    %v245 = vunpack.c.l.b16 %v230
    %v246 = vunpack.c.l.b16 %v231
    %v247 = vunpack.c.l.b16 %v232
    %v248 = vunpack.c.l.b16 %v233
    %v249 = vpack.c.b16 %v246, %v245
    %v250 = vpack.c.b16 %v248, %v247
    %v254 = vsel %vm184, %v229, 0
    %256 = vmatprep.subr.bf16.mxu0 0
    %257 = vmatpush1.bf16.msra.mxu0 %v249
    %258 = vmatprep.subr.bf16.mxu0 0
    %259 = vmatpush1.bf16.msra.mxu0 %v250
    %260 = vmatprep.subr.bf16.mxu0 0
    %261 = vmatpush1.bf16.msra.mxu0 0
    %262 = vmatprep.subr.bf16.mxu0 0
    %263 = vmatpush1.bf16.msra.mxu0 0
    %264 = vmatprep.subr.bf16.mxu0 0
    %265 = vmatpush1.bf16.msra.mxu0 0
    %266 = vmatprep.subr.bf16.mxu0 0
    %267 = vmatpush1.bf16.msra.mxu0 0
    %268 = vmatprep.subr.bf16.mxu0 0
    %269 = vmatpush1.bf16.msra.mxu0 0
    %270 = vmatprep.subr.bf16.mxu0 0
    %271 = vmatpush1.bf16.msra.mxu0 0
    %272 = vmatprep.subr.bf16.mxu0 0
    %273 = vmatpush1.bf16.msra.mxu0 0
    %274 = vmatprep.subr.bf16.mxu0 0
    %275 = vmatpush1.bf16.msra.mxu0 0
    %276 = vmatprep.subr.bf16.mxu0 0
    %277 = vmatpush1.bf16.msra.mxu0 0
    %278 = vmatprep.subr.bf16.mxu0 0
    %279 = vmatpush1.bf16.msra.mxu0 0
    %280 = vmatprep.subr.bf16.mxu0 0
    %281 = vmatpush1.bf16.msra.mxu0 0
    %282 = vmatprep.subr.bf16.mxu0 0
    %283 = vmatpush1.bf16.msra.mxu0 0
    %284 = vmatprep.subr.bf16.mxu0 0
    %285 = vmatpush1.bf16.msra.mxu0 0
    %286 = vmatprep.subr.bf16.mxu0 0
    %287 = vmatpush1.bf16.msra.mxu0 0
    %288 = vmatprep.mubr.bf16.mxu0 0
    %289 = vmatmul.mubr.bf16.gmra.mrb[0].mxu0 %v254
    %v290 = vpop.f32.mrb[0].mxu0
    %v291 = vadd.f32 %v239, %v290
    %v292 = vpop.f32.mrb[0].mxu0
    %v293 = vpop.f32.mrb[0].mxu0
    %v294 = vpop.f32.mrb[0].mxu0
    %295 = vdwg.mxu0
    %v296 = vmax.f32 %v291, 0.0
    %v297 = vpack.c.bf16 %v296, %v296
    %v298 = vld [vmem:[#allocation8] sm:$0xff]
    %v299 = vld [vmem:[#allocation8 + $0x8] sm:$0xff]
    %v300 = vld [vmem:[#allocation8 + $0x10] sm:$0xff]
    %v301 = vld [vmem:[#allocation8 + $0x18] sm:$0xff]
    %v302 = vld [vmem:[#allocation8 + $0x20] sm:$0xff]
    %v303 = vld [vmem:[#allocation8 + $0x28] sm:$0xff]
    %v304 = vld [vmem:[#allocation8 + $0x30] sm:$0xff]
    %v305 = vld [vmem:[#allocation8 + $0x38] sm:$0xf]
    %v306 = vld [vmem:[#allocation8 + $0x3c] sm:$0xff]
    %v307 = vld [vmem:[#allocation8 + $0x44] sm:$0xff]
    %v308 = vld [vmem:[#allocation8 + $0x4c] sm:$0xff]
    %v309 = vld [vmem:[#allocation8 + $0x54] sm:$0xff]
    %v310 = vld [vmem:[#allocation8 + $0x5c] sm:$0xff]
    %v311 = vld [vmem:[#allocation8 + $0x64] sm:$0xff]
    %v312 = vld [vmem:[#allocation8 + $0x6c] sm:$0xff]
    %v313 = vld [vmem:[#allocation8 + $0x74] sm:$0xf]
    %v314 = vld [vmem:[#allocation8 + $0x78] sm:$0xff]
    %v315 = vld [vmem:[#allocation8 + $0x80] sm:$0xff]
    %v316 = vld [vmem:[#allocation8 + $0x88] sm:$0xff]
    %v317 = vld [vmem:[#allocation8 + $0x90] sm:$0xff]
    %v318 = vld [vmem:[#allocation8 + $0x98] sm:$0xff]
    %v319 = vld [vmem:[#allocation8 + $0xa0] sm:$0xff]
    %v320 = vld [vmem:[#allocation8 + $0xa8] sm:$0xff]
    %v321 = vld [vmem:[#allocation8 + $0xb0] sm:$0xf]
    %v322 = vld [vmem:[#allocation8 + $0xb4] sm:$0xff]
    %v323 = vld [vmem:[#allocation8 + $0xbc] sm:$0xff]
    %v324 = vld [vmem:[#allocation8 + $0xc4] sm:$0xff]
    %v325 = vld [vmem:[#allocation8 + $0xcc] sm:$0xff]
    %v326 = vld [vmem:[#allocation8 + $0xd4] sm:$0xff]
    %v327 = vld [vmem:[#allocation8 + $0xdc] sm:$0xff]
    %v328 = vld [vmem:[#allocation8 + $0xe4] sm:$0xff]
    %v329 = vld [vmem:[#allocation8 + $0xec] sm:$0xf]
    %v330 = vld [vmem:[#allocation10] sm:$0xff]
    %v331 = vld [vmem:[#allocation10 + $0x8] sm:$0x7f]
    %v334 = vlaneseq
    %v335 = vshrl.u32 %v334, 7
    %v336 = vsub.s32 0, %v335
    %v337 = vrot.slane %v330, %v336
    %v338 = vlaneseq
    %v339 = vshrl.u32 %v338, 7
    %v340 = vsub.s32 1, %v339
    %v341 = vrot.slane %v330, %v340
    %v342 = vlaneseq
    %v343 = vshrl.u32 %v342, 7
    %v344 = vsub.s32 2, %v343
    %v345 = vrot.slane %v330, %v344
    %v346 = vlaneseq
    %v347 = vshrl.u32 %v346, 7
    %v348 = vsub.s32 3, %v347
    %v349 = vrot.slane %v330, %v348
    %v350 = vlaneseq
    %v351 = vshrl.u32 %v350, 7
    %v352 = vsub.s32 4, %v351
    %v353 = vrot.slane %v330, %v352
    %v354 = vlaneseq
    %v355 = vshrl.u32 %v354, 7
    %v356 = vsub.s32 5, %v355
    %v357 = vrot.slane %v330, %v356
    %v358 = vlaneseq
    %v359 = vshrl.u32 %v358, 7
    %v360 = vsub.s32 6, %v359
    %v361 = vrot.slane %v330, %v360
    %v362 = vlaneseq
    %v363 = vshrl.u32 %v362, 7
    %v364 = vsub.s32 7, %v363
    %v365 = vrot.slane %v330, %v364
    %v366 = vlaneseq
    %v367 = vshrl.u32 %v366, 7
    %v368 = vsub.s32 0, %v367
    %v369 = vrot.slane %v331, %v368
    %v370 = vlaneseq
    %v371 = vshrl.u32 %v370, 7
    %v372 = vsub.s32 1, %v371
    %v373 = vrot.slane %v331, %v372
    %v374 = vlaneseq
    %v375 = vshrl.u32 %v374, 7
    %v376 = vsub.s32 2, %v375
    %v377 = vrot.slane %v331, %v376
    %v378 = vlaneseq
    %v379 = vshrl.u32 %v378, 7
    %v380 = vsub.s32 3, %v379
    %v381 = vrot.slane %v331, %v380
    %v382 = vlaneseq
    %v383 = vshrl.u32 %v382, 7
    %v384 = vsub.s32 4, %v383
    %v385 = vrot.slane %v331, %v384
    %v386 = vlaneseq
    %v387 = vshrl.u32 %v386, 7
    %v388 = vsub.s32 5, %v387
    %v389 = vrot.slane %v331, %v388
    %v390 = vlaneseq
    %v391 = vshrl.u32 %v390, 7
    %v392 = vsub.s32 6, %v391
    %v393 = vrot.slane %v331, %v392
    %v441 = vunpack.c.l.b16 %v298
    %v442 = vunpack.c.h.b16 %v298
    %v443 = vunpack.c.l.b16 %v299
    %v444 = vunpack.c.h.b16 %v299
    %v445 = vunpack.c.l.b16 %v300
    %v446 = vunpack.c.h.b16 %v300
    %v447 = vunpack.c.l.b16 %v301
    %v448 = vunpack.c.h.b16 %v301
    %v449 = vunpack.c.l.b16 %v302
    %v450 = vunpack.c.h.b16 %v302
    %v451 = vunpack.c.l.b16 %v303
    %v452 = vunpack.c.h.b16 %v303
    %v453 = vunpack.c.l.b16 %v304
    %v454 = vunpack.c.h.b16 %v304
    %v455 = vunpack.c.l.b16 %v305
    %v456 = vunpack.c.l.b16 %v306
    %v457 = vunpack.c.h.b16 %v306
    %v458 = vunpack.c.l.b16 %v307
    %v459 = vunpack.c.h.b16 %v307
    %v460 = vunpack.c.l.b16 %v308
    %v461 = vunpack.c.h.b16 %v308
    %v462 = vunpack.c.l.b16 %v309
    %v463 = vunpack.c.h.b16 %v309
    %v464 = vunpack.c.l.b16 %v310
    %v465 = vunpack.c.h.b16 %v310
    %v466 = vunpack.c.l.b16 %v311
    %v467 = vunpack.c.h.b16 %v311
    %v468 = vunpack.c.l.b16 %v312
    %v469 = vunpack.c.h.b16 %v312
    %v470 = vunpack.c.l.b16 %v313
    %v471 = vunpack.c.l.b16 %v314
    %v472 = vunpack.c.h.b16 %v314
    %v473 = vunpack.c.l.b16 %v315
    %v474 = vunpack.c.h.b16 %v315
    %v475 = vunpack.c.l.b16 %v316
    %v476 = vunpack.c.h.b16 %v316
    %v477 = vunpack.c.l.b16 %v317
    %v478 = vunpack.c.h.b16 %v317
    %v479 = vunpack.c.l.b16 %v318
    %v480 = vunpack.c.h.b16 %v318
    %v481 = vunpack.c.l.b16 %v319
    %v482 = vunpack.c.h.b16 %v319
    %v483 = vunpack.c.l.b16 %v320
    %v484 = vunpack.c.h.b16 %v320
    %v485 = vunpack.c.l.b16 %v321
    %v486 = vunpack.c.l.b16 %v322
    %v487 = vunpack.c.h.b16 %v322
    %v488 = vunpack.c.l.b16 %v323
    %v489 = vunpack.c.h.b16 %v323
    %v490 = vunpack.c.l.b16 %v324
    %v491 = vunpack.c.h.b16 %v324
    %v492 = vunpack.c.l.b16 %v325
    %v493 = vunpack.c.h.b16 %v325
    %v494 = vunpack.c.l.b16 %v326
    %v495 = vunpack.c.h.b16 %v326
    %v496 = vunpack.c.l.b16 %v327
    %v497 = vunpack.c.h.b16 %v327
    %v498 = vunpack.c.l.b16 %v328
    %v499 = vunpack.c.h.b16 %v328
    %v500 = vunpack.c.l.b16 %v329
    %v501 = vpack.c.b16 %v456, %v441
    %v502 = vpack.c.b16 %v457, %v442
    %v503 = vpack.c.b16 %v458, %v443
    %v504 = vpack.c.b16 %v459, %v444
    %v505 = vpack.c.b16 %v460, %v445
    %v506 = vpack.c.b16 %v461, %v446
    %v507 = vpack.c.b16 %v462, %v447
    %v508 = vpack.c.b16 %v463, %v448
    %v509 = vpack.c.b16 %v464, %v449
    %v510 = vpack.c.b16 %v465, %v450
    %v511 = vpack.c.b16 %v466, %v451
    %v512 = vpack.c.b16 %v467, %v452
    %v513 = vpack.c.b16 %v468, %v453
    %v514 = vpack.c.b16 %v469, %v454
    %v515 = vpack.c.b16 %v470, %v455
    %v516 = vpack.c.b16 %v486, %v471
    %v517 = vpack.c.b16 %v487, %v472
    %v518 = vpack.c.b16 %v488, %v473
    %v519 = vpack.c.b16 %v489, %v474
    %v520 = vpack.c.b16 %v490, %v475
    %v521 = vpack.c.b16 %v491, %v476
    %v522 = vpack.c.b16 %v492, %v477
    %v523 = vpack.c.b16 %v493, %v478
    %v524 = vpack.c.b16 %v494, %v479
    %v525 = vpack.c.b16 %v495, %v480
    %v526 = vpack.c.b16 %v496, %v481
    %v527 = vpack.c.b16 %v497, %v482
    %v528 = vpack.c.b16 %v498, %v483
    %v529 = vpack.c.b16 %v499, %v484
    %v530 = vpack.c.b16 %v500, %v485
    %v562 = vsel %vm184, %v297, 0
    %564 = vmatprep.subr.bf16.mxu0 %v502
    %565 = vmatpush1.bf16.msra.mxu0 %v501
    %566 = vmatprep.subr.bf16.mxu0 %v517
    %567 = vmatpush1.bf16.msra.mxu0 %v516
    %568 = vmatprep.subr.bf16.mxu0 0
    %569 = vmatpush1.bf16.msra.mxu0 0
    %570 = vmatprep.subr.bf16.mxu0 0
    %571 = vmatpush1.bf16.msra.mxu0 0
    %572 = vmatprep.subr.bf16.mxu0 0
    %573 = vmatpush1.bf16.msra.mxu0 0
    %574 = vmatprep.subr.bf16.mxu0 0
    %575 = vmatpush1.bf16.msra.mxu0 0
    %576 = vmatprep.subr.bf16.mxu0 0
    %577 = vmatpush1.bf16.msra.mxu0 0
    %578 = vmatprep.subr.bf16.mxu0 0
    %579 = vmatpush1.bf16.msra.mxu0 0
    %580 = vmatprep.subr.bf16.mxu0 0
    %581 = vmatpush1.bf16.msra.mxu0 0
    %582 = vmatprep.subr.bf16.mxu0 0
    %583 = vmatpush1.bf16.msra.mxu0 0
    %584 = vmatprep.subr.bf16.mxu0 0
    %585 = vmatpush1.bf16.msra.mxu0 0
    %586 = vmatprep.subr.bf16.mxu0 0
    %587 = vmatpush1.bf16.msra.mxu0 0
    %588 = vmatprep.subr.bf16.mxu0 0
    %589 = vmatpush1.bf16.msra.mxu0 0
    %590 = vmatprep.subr.bf16.mxu0 0
    %591 = vmatpush1.bf16.msra.mxu0 0
    %592 = vmatprep.subr.bf16.mxu0 0
    %593 = vmatpush1.bf16.msra.mxu0 0
    %594 = vmatprep.subr.bf16.mxu0 0
    %595 = vmatpush1.bf16.msra.mxu0 0
    %596 = vmatprep.mubr.bf16.mxu0 0
    %597 = vmatmul.mubr.bf16.gmra.mrb[0].mxu0 %v562
    %v598 = vpop.f32.mrb[0].mxu0
    %v599 = vadd.f32 %v337, %v598
    %v600 = vpop.f32.mrb[0].mxu0
    %v601 = vadd.f32 %v341, %v600
    %v602 = vpop.f32.mrb[0].mxu0
    %v603 = vpop.f32.mrb[0].mxu0
    %604 = vdwg.mxu0
    %605 = vmatprep.subr.bf16.mxu0 %v504
    %606 = vmatpush1.bf16.msra.mxu0 %v503
    %607 = vmatprep.subr.bf16.mxu0 %v519
    %608 = vmatpush1.bf16.msra.mxu0 %v518
    %609 = vmatprep.subr.bf16.mxu0 0
    %610 = vmatpush1.bf16.msra.mxu0 0
    %611 = vmatprep.subr.bf16.mxu0 0
    %612 = vmatpush1.bf16.msra.mxu0 0
    %613 = vmatprep.subr.bf16.mxu0 0
    %614 = vmatpush1.bf16.msra.mxu0 0
    %615 = vmatprep.subr.bf16.mxu0 0
    %616 = vmatpush1.bf16.msra.mxu0 0
    %617 = vmatprep.subr.bf16.mxu0 0
    %618 = vmatpush1.bf16.msra.mxu0 0
    %619 = vmatprep.subr.bf16.mxu0 0
    %620 = vmatpush1.bf16.msra.mxu0 0
    %621 = vmatprep.subr.bf16.mxu0 0
    %622 = vmatpush1.bf16.msra.mxu0 0
    %623 = vmatprep.subr.bf16.mxu0 0
    %624 = vmatpush1.bf16.msra.mxu0 0
    %625 = vmatprep.subr.bf16.mxu0 0
    %626 = vmatpush1.bf16.msra.mxu0 0
    %627 = vmatprep.subr.bf16.mxu0 0
    %628 = vmatpush1.bf16.msra.mxu0 0
    %629 = vmatprep.subr.bf16.mxu0 0
    %630 = vmatpush1.bf16.msra.mxu0 0
    %631 = vmatprep.subr.bf16.mxu0 0
    %632 = vmatpush1.bf16.msra.mxu0 0
    %633 = vmatprep.subr.bf16.mxu0 0
    %634 = vmatpush1.bf16.msra.mxu0 0
    %635 = vmatprep.subr.bf16.mxu0 0
    %636 = vmatpush1.bf16.msra.mxu0 0
    %637 = vmatprep.mubr.bf16.mxu0 0
    %638 = vmatmul.mubr.bf16.gmra.mrb[0].mxu0 %v562
    %v639 = vpop.f32.mrb[0].mxu0
    %v640 = vadd.f32 %v345, %v639
    %v641 = vpop.f32.mrb[0].mxu0
    %v642 = vadd.f32 %v349, %v641
    %v643 = vpop.f32.mrb[0].mxu0
    %v644 = vpop.f32.mrb[0].mxu0
    %645 = vdwg.mxu0
    %646 = vmatprep.subr.bf16.mxu0 %v506
    %647 = vmatpush1.bf16.msra.mxu0 %v505
    %648 = vmatprep.subr.bf16.mxu0 %v521
    %649 = vmatpush1.bf16.msra.mxu0 %v520
    %650 = vmatprep.subr.bf16.mxu0 0
    %651 = vmatpush1.bf16.msra.mxu0 0
    %652 = vmatprep.subr.bf16.mxu0 0
    %653 = vmatpush1.bf16.msra.mxu0 0
    %654 = vmatprep.subr.bf16.mxu0 0
    %655 = vmatpush1.bf16.msra.mxu0 0
    %656 = vmatprep.subr.bf16.mxu0 0
    %657 = vmatpush1.bf16.msra.mxu0 0
    %658 = vmatprep.subr.bf16.mxu0 0
    %659 = vmatpush1.bf16.msra.mxu0 0
    %660 = vmatprep.subr.bf16.mxu0 0
    %661 = vmatpush1.bf16.msra.mxu0 0
    %662 = vmatprep.subr.bf16.mxu0 0
    %663 = vmatpush1.bf16.msra.mxu0 0
    %664 = vmatprep.subr.bf16.mxu0 0
    %665 = vmatpush1.bf16.msra.mxu0 0
    %666 = vmatprep.subr.bf16.mxu0 0
    %667 = vmatpush1.bf16.msra.mxu0 0
    %668 = vmatprep.subr.bf16.mxu0 0
    %669 = vmatpush1.bf16.msra.mxu0 0
    %670 = vmatprep.subr.bf16.mxu0 0
    %671 = vmatpush1.bf16.msra.mxu0 0
    %672 = vmatprep.subr.bf16.mxu0 0
    %673 = vmatpush1.bf16.msra.mxu0 0
    %674 = vmatprep.subr.bf16.mxu0 0
    %675 = vmatpush1.bf16.msra.mxu0 0
    %676 = vmatprep.subr.bf16.mxu0 0
    %677 = vmatpush1.bf16.msra.mxu0 0
    %678 = vmatprep.mubr.bf16.mxu0 0
    %679 = vmatmul.mubr.bf16.gmra.mrb[0].mxu0 %v562
    %v680 = vpop.f32.mrb[0].mxu0
    %v681 = vadd.f32 %v353, %v680
    %v682 = vpop.f32.mrb[0].mxu0
    %v683 = vadd.f32 %v357, %v682
    %v684 = vpop.f32.mrb[0].mxu0
    %v685 = vpop.f32.mrb[0].mxu0
    %686 = vdwg.mxu0
    %687 = vmatprep.subr.bf16.mxu0 %v508
    %688 = vmatpush1.bf16.msra.mxu0 %v507
    %689 = vmatprep.subr.bf16.mxu0 %v523
    %690 = vmatpush1.bf16.msra.mxu0 %v522
    %691 = vmatprep.subr.bf16.mxu0 0
    %692 = vmatpush1.bf16.msra.mxu0 0
    %693 = vmatprep.subr.bf16.mxu0 0
    %694 = vmatpush1.bf16.msra.mxu0 0
    %695 = vmatprep.subr.bf16.mxu0 0
    %696 = vmatpush1.bf16.msra.mxu0 0
    %697 = vmatprep.subr.bf16.mxu0 0
    %698 = vmatpush1.bf16.msra.mxu0 0
    %699 = vmatprep.subr.bf16.mxu0 0
    %700 = vmatpush1.bf16.msra.mxu0 0
    %701 = vmatprep.subr.bf16.mxu0 0
    %702 = vmatpush1.bf16.msra.mxu0 0
    %703 = vmatprep.subr.bf16.mxu0 0
    %704 = vmatpush1.bf16.msra.mxu0 0
    %705 = vmatprep.subr.bf16.mxu0 0
    %706 = vmatpush1.bf16.msra.mxu0 0
    %707 = vmatprep.subr.bf16.mxu0 0
    %708 = vmatpush1.bf16.msra.mxu0 0
    %709 = vmatprep.subr.bf16.mxu0 0
    %710 = vmatpush1.bf16.msra.mxu0 0
    %711 = vmatprep.subr.bf16.mxu0 0
    %712 = vmatpush1.bf16.msra.mxu0 0
    %713 = vmatprep.subr.bf16.mxu0 0
    %714 = vmatpush1.bf16.msra.mxu0 0
    %715 = vmatprep.subr.bf16.mxu0 0
    %716 = vmatpush1.bf16.msra.mxu0 0
    %717 = vmatprep.subr.bf16.mxu0 0
    %718 = vmatpush1.bf16.msra.mxu0 0
    %719 = vmatprep.mubr.bf16.mxu0 0
    %720 = vmatmul.mubr.bf16.gmra.mrb[0].mxu0 %v562
    %v721 = vpop.f32.mrb[0].mxu0
    %v722 = vadd.f32 %v361, %v721
    %v723 = vpop.f32.mrb[0].mxu0
    %v724 = vadd.f32 %v365, %v723
    %v725 = vpop.f32.mrb[0].mxu0
    %v726 = vpop.f32.mrb[0].mxu0
    %727 = vdwg.mxu0
    %728 = vmatprep.subr.bf16.mxu0 %v510
    %729 = vmatpush1.bf16.msra.mxu0 %v509
    %730 = vmatprep.subr.bf16.mxu0 %v525
    %731 = vmatpush1.bf16.msra.mxu0 %v524
    %732 = vmatprep.subr.bf16.mxu0 0
    %733 = vmatpush1.bf16.msra.mxu0 0
    %734 = vmatprep.subr.bf16.mxu0 0
    %735 = vmatpush1.bf16.msra.mxu0 0
    %736 = vmatprep.subr.bf16.mxu0 0
    %737 = vmatpush1.bf16.msra.mxu0 0
    %738 = vmatprep.subr.bf16.mxu0 0
    %739 = vmatpush1.bf16.msra.mxu0 0
    %740 = vmatprep.subr.bf16.mxu0 0
    %741 = vmatpush1.bf16.msra.mxu0 0
    %742 = vmatprep.subr.bf16.mxu0 0
    %743 = vmatpush1.bf16.msra.mxu0 0
    %744 = vmatprep.subr.bf16.mxu0 0
    %745 = vmatpush1.bf16.msra.mxu0 0
    %746 = vmatprep.subr.bf16.mxu0 0
    %747 = vmatpush1.bf16.msra.mxu0 0
    %748 = vmatprep.subr.bf16.mxu0 0
    %749 = vmatpush1.bf16.msra.mxu0 0
    %750 = vmatprep.subr.bf16.mxu0 0
    %751 = vmatpush1.bf16.msra.mxu0 0
    %752 = vmatprep.subr.bf16.mxu0 0
    %753 = vmatpush1.bf16.msra.mxu0 0
    %754 = vmatprep.subr.bf16.mxu0 0
    %755 = vmatpush1.bf16.msra.mxu0 0
    %756 = vmatprep.subr.bf16.mxu0 0
    %757 = vmatpush1.bf16.msra.mxu0 0
    %758 = vmatprep.subr.bf16.mxu0 0
    %759 = vmatpush1.bf16.msra.mxu0 0
    %760 = vmatprep.mubr.bf16.mxu0 0
    %761 = vmatmul.mubr.bf16.gmra.mrb[0].mxu0 %v562
    %v762 = vpop.f32.mrb[0].mxu0
    %v763 = vadd.f32 %v369, %v762
    %v764 = vpop.f32.mrb[0].mxu0
    %v765 = vadd.f32 %v373, %v764
    %v766 = vpop.f32.mrb[0].mxu0
    %v767 = vpop.f32.mrb[0].mxu0
    %768 = vdwg.mxu0
    %769 = vmatprep.subr.bf16.mxu0 %v512
    %770 = vmatpush1.bf16.msra.mxu0 %v511
    %771 = vmatprep.subr.bf16.mxu0 %v527
    %772 = vmatpush1.bf16.msra.mxu0 %v526
    %773 = vmatprep.subr.bf16.mxu0 0
    %774 = vmatpush1.bf16.msra.mxu0 0
    %775 = vmatprep.subr.bf16.mxu0 0
    %776 = vmatpush1.bf16.msra.mxu0 0
    %777 = vmatprep.subr.bf16.mxu0 0
    %778 = vmatpush1.bf16.msra.mxu0 0
    %779 = vmatprep.subr.bf16.mxu0 0
    %780 = vmatpush1.bf16.msra.mxu0 0
    %781 = vmatprep.subr.bf16.mxu0 0
    %782 = vmatpush1.bf16.msra.mxu0 0
    %783 = vmatprep.subr.bf16.mxu0 0
    %784 = vmatpush1.bf16.msra.mxu0 0
    %785 = vmatprep.subr.bf16.mxu0 0
    %786 = vmatpush1.bf16.msra.mxu0 0
    %787 = vmatprep.subr.bf16.mxu0 0
    %788 = vmatpush1.bf16.msra.mxu0 0
    %789 = vmatprep.subr.bf16.mxu0 0
    %790 = vmatpush1.bf16.msra.mxu0 0
    %791 = vmatprep.subr.bf16.mxu0 0
    %792 = vmatpush1.bf16.msra.mxu0 0
    %793 = vmatprep.subr.bf16.mxu0 0
    %794 = vmatpush1.bf16.msra.mxu0 0
    %795 = vmatprep.subr.bf16.mxu0 0
    %796 = vmatpush1.bf16.msra.mxu0 0
    %797 = vmatprep.subr.bf16.mxu0 0
    %798 = vmatpush1.bf16.msra.mxu0 0
    %799 = vmatprep.subr.bf16.mxu0 0
    %800 = vmatpush1.bf16.msra.mxu0 0
    %801 = vmatprep.mubr.bf16.mxu0 0
    %802 = vmatmul.mubr.bf16.gmra.mrb[0].mxu0 %v562
    %v803 = vpop.f32.mrb[0].mxu0
    %v804 = vadd.f32 %v377, %v803
    %v805 = vpop.f32.mrb[0].mxu0
    %v806 = vadd.f32 %v381, %v805
    %v807 = vpop.f32.mrb[0].mxu0
    %v808 = vpop.f32.mrb[0].mxu0
    %809 = vdwg.mxu0
    %810 = vmatprep.subr.bf16.mxu0 %v514
    %811 = vmatpush1.bf16.msra.mxu0 %v513
    %812 = vmatprep.subr.bf16.mxu0 %v529
    %813 = vmatpush1.bf16.msra.mxu0 %v528
    %814 = vmatprep.subr.bf16.mxu0 0
    %815 = vmatpush1.bf16.msra.mxu0 0
    %816 = vmatprep.subr.bf16.mxu0 0
    %817 = vmatpush1.bf16.msra.mxu0 0
    %818 = vmatprep.subr.bf16.mxu0 0
    %819 = vmatpush1.bf16.msra.mxu0 0
    %820 = vmatprep.subr.bf16.mxu0 0
    %821 = vmatpush1.bf16.msra.mxu0 0
    %822 = vmatprep.subr.bf16.mxu0 0
    %823 = vmatpush1.bf16.msra.mxu0 0
    %824 = vmatprep.subr.bf16.mxu0 0
    %825 = vmatpush1.bf16.msra.mxu0 0
    %826 = vmatprep.subr.bf16.mxu0 0
    %827 = vmatpush1.bf16.msra.mxu0 0
    %828 = vmatprep.subr.bf16.mxu0 0
    %829 = vmatpush1.bf16.msra.mxu0 0
    %830 = vmatprep.subr.bf16.mxu0 0
    %831 = vmatpush1.bf16.msra.mxu0 0
    %832 = vmatprep.subr.bf16.mxu0 0
    %833 = vmatpush1.bf16.msra.mxu0 0
    %834 = vmatprep.subr.bf16.mxu0 0
    %835 = vmatpush1.bf16.msra.mxu0 0
    %836 = vmatprep.subr.bf16.mxu0 0
    %837 = vmatpush1.bf16.msra.mxu0 0
    %838 = vmatprep.subr.bf16.mxu0 0
    %839 = vmatpush1.bf16.msra.mxu0 0
    %840 = vmatprep.subr.bf16.mxu0 0
    %841 = vmatpush1.bf16.msra.mxu0 0
    %842 = vmatprep.mubr.bf16.mxu0 0
    %843 = vmatmul.mubr.bf16.gmra.mrb[0].mxu0 %v562
    %v844 = vpop.f32.mrb[0].mxu0
    %v845 = vadd.f32 %v385, %v844
    %v846 = vpop.f32.mrb[0].mxu0
    %v847 = vadd.f32 %v389, %v846
    %v848 = vpop.f32.mrb[0].mxu0
    %v849 = vpop.f32.mrb[0].mxu0
    %850 = vdwg.mxu0
    %851 = vmatprep.subr.bf16.mxu0 0
    %852 = vmatpush1.bf16.msra.mxu0 %v515
    %853 = vmatprep.subr.bf16.mxu0 0
    %854 = vmatpush1.bf16.msra.mxu0 %v530
    %855 = vmatprep.subr.bf16.mxu0 0
    %856 = vmatpush1.bf16.msra.mxu0 0
    %857 = vmatprep.subr.bf16.mxu0 0
    %858 = vmatpush1.bf16.msra.mxu0 0
    %859 = vmatprep.subr.bf16.mxu0 0
    %860 = vmatpush1.bf16.msra.mxu0 0
    %861 = vmatprep.subr.bf16.mxu0 0
    %862 = vmatpush1.bf16.msra.mxu0 0
    %863 = vmatprep.subr.bf16.mxu0 0
    %864 = vmatpush1.bf16.msra.mxu0 0
    %865 = vmatprep.subr.bf16.mxu0 0
    %866 = vmatpush1.bf16.msra.mxu0 0
    %867 = vmatprep.subr.bf16.mxu0 0
    %868 = vmatpush1.bf16.msra.mxu0 0
    %869 = vmatprep.subr.bf16.mxu0 0
    %870 = vmatpush1.bf16.msra.mxu0 0
    %871 = vmatprep.subr.bf16.mxu0 0
    %872 = vmatpush1.bf16.msra.mxu0 0
    %873 = vmatprep.subr.bf16.mxu0 0
    %874 = vmatpush1.bf16.msra.mxu0 0
    %875 = vmatprep.subr.bf16.mxu0 0
    %876 = vmatpush1.bf16.msra.mxu0 0
    %877 = vmatprep.subr.bf16.mxu0 0
    %878 = vmatpush1.bf16.msra.mxu0 0
    %879 = vmatprep.subr.bf16.mxu0 0
    %880 = vmatpush1.bf16.msra.mxu0 0
    %881 = vmatprep.subr.bf16.mxu0 0
    %882 = vmatpush1.bf16.msra.mxu0 0
    %883 = vmatprep.mubr.bf16.mxu0 0
    %884 = vmatmul.mubr.bf16.gmra.mrb[0].mxu0 %v562
    %v885 = vpop.f32.mrb[0].mxu0
    %v886 = vadd.f32 %v393, %v885
    %v887 = vpop.f32.mrb[0].mxu0
    %v888 = vpop.f32.mrb[0].mxu0
    %v889 = vpop.f32.mrb[0].mxu0
    %890 = vdwg.mxu0
    %v891 = vmul.f32 %v599, 1.442695
    %v892 = vpow.pop %v891
    %v893 = vmul.f32 %v601, 1.442695
    %v894 = vpow.pop %v893
    %v895 = vmul.f32 %v640, 1.442695
    %v896 = vpow.pop %v895
    %v897 = vmul.f32 %v642, 1.442695
    %v898 = vpow.pop %v897
    %v899 = vmul.f32 %v681, 1.442695
    %v900 = vpow.pop %v899
    %v901 = vmul.f32 %v683, 1.442695
    %v902 = vpow.pop %v901
    %v903 = vmul.f32 %v722, 1.442695
    %v904 = vpow.pop %v903
    %v905 = vmul.f32 %v724, 1.442695
    %v906 = vpow.pop %v905
    %v907 = vmul.f32 %v763, 1.442695
    %v908 = vpow.pop %v907
    %v909 = vmul.f32 %v765, 1.442695
    %v910 = vpow.pop %v909
    %v911 = vmul.f32 %v804, 1.442695
    %v912 = vpow.pop %v911
    %v913 = vmul.f32 %v806, 1.442695
    %v914 = vpow.pop %v913
    %v915 = vmul.f32 %v845, 1.442695
    %v916 = vpow.pop %v915
    %v917 = vmul.f32 %v847, 1.442695
    %v918 = vpow.pop %v917
    %v919 = vmul.f32 %v886, 1.442695
    %v920 = vpow.pop %v919
    %v921 = vlaneseq
    %v922 = vand.u32 %v921, 127
    %v923 = vadd.s32 %v922, 128
    %v924 = vadd.s32 %v922, 256
    %v925 = vadd.s32 %v922, 384
    %v926 = vadd.s32 %v922, 512
    %vm927 = vcmp.ge.s32.totalorder %v922, 50
    %vm928 = vcmp.ge.s32.totalorder %v923, 50
    %vm929 = vcmp.ge.s32.totalorder %v924, 50
    %vm930 = vcmp.ge.s32.totalorder %v925, 50
    %vm931 = vcmp.ge.s32.totalorder %v926, 50
    %vm932 = vcmp.lt.s32.totalorder %v922, 550
    %vm933 = vcmp.lt.s32.totalorder %v923, 550
    %vm934 = vcmp.lt.s32.totalorder %v924, 550
    %vm935 = vcmp.lt.s32.totalorder %v925, 550
    %vm936 = vcmp.lt.s32.totalorder %v926, 550
    %vm937 = vmand %vm927, %vm932
    %vm938 = vmand %vm928, %vm933
    %vm939 = vmand %vm929, %vm934
    %vm940 = vmand %vm930, %vm935
    %vm941 = vmand %vm931, %vm936
    %v942 = vsel %vm937, 1, 0
    %v943 = vsel %vm938, 1, 0
    %v944 = vsel %vm939, 1, 0
    %v945 = vsel %vm940, 1, 0
    %v946 = vsel %vm941, 1, 0
    %vm947 = vcmp.eq.s32.totalorder %v942, 1
    %vm948 = vcmp.eq.s32.totalorder %v943, 1
    %vm949 = vcmp.eq.s32.totalorder %v944, 1
    %vm950 = vcmp.eq.s32.totalorder %v945, 1
    %vm951 = vcmp.eq.s32.totalorder %v946, 1
    %v952 = vsel %vm947, %v892, 0.0
    %v953 = vsel %vm948, %v894, 0.0
    %v954 = vsel %vm949, %v896, 0.0
    %v955 = vsel %vm950, %v898, 0.0
    %v956 = vsel %vm951, %v900, 0.0
    %v957 = vadd.f32 %v952, %v953
    %v958 = vadd.f32 %v957, %v954
    %v959 = vadd.f32 %v958, %v955
    %v960 = vadd.f32 %v959, %v956
    %961 = vadd.xlane.f32.xlu0 %v960
    %v962 = vpop.xlane.xlu0 %961
    %v963 = vrcp.pop %v962
    %v964 = vmul.f32 %v892, %v963
    %v965 = vmul.f32 %v894, %v963
    %v966 = vmul.f32 %v896, %v963
    %v967 = vmul.f32 %v898, %v963
    %v968 = vmul.f32 %v900, %v963
    %v969 = vmul.f32 %v902, %v963
    %v970 = vmul.f32 %v904, %v963
    %v971 = vmul.f32 %v906, %v963
    %v972 = vmul.f32 %v908, %v963
    %v973 = vmul.f32 %v910, %v963
    %v974 = vmul.f32 %v912, %v963
    %v975 = vmul.f32 %v914, %v963
    %v976 = vmul.f32 %v916, %v963
    %v977 = vmul.f32 %v918, %v963
    %v978 = vmul.f32 %v920, %v963
    %979 = vst [vmem:[#allocation11] sm:$0xff] %v964
    %980 = vst [vmem:[#allocation11 + $0x8] sm:$0xff] %v965
    %981 = vst [vmem:[#allocation11 + $0x10] sm:$0xff] %v966
    %982 = vst [vmem:[#allocation11 + $0x18] sm:$0xff] %v967
    %983 = vst [vmem:[#allocation11 + $0x20] sm:$0xff] %v968
    %984 = vst [vmem:[#allocation11 + $0x28] sm:$0xff] %v969
    %985 = vst [vmem:[#allocation11 + $0x30] sm:$0xff] %v970
    %986 = vst [vmem:[#allocation11 + $0x38] sm:$0xff] %v971
    %987 = vst [vmem:[#allocation11 + $0x40] sm:$0xff] %v972
    %988 = vst [vmem:[#allocation11 + $0x48] sm:$0xff] %v973
    %989 = vst [vmem:[#allocation11 + $0x50] sm:$0xff] %v974
    %990 = vst [vmem:[#allocation11 + $0x58] sm:$0xff] %v975
    %991 = vst [vmem:[#allocation11 + $0x60] sm:$0xff] %v976
    %992 = vst [vmem:[#allocation11 + $0x68] sm:$0xff] %v977
    %vm993 = vcmask 72704
    %994 = vst.msk [vmem:[#allocation11 + $0x70] sm:$0xff] %vm993, %v978
    // Predicated region
    $region58: #{tpu_custom_call.1} parent=1 // pred_check
      _
    $region59: #{tpu_custom_call.1} parent=1 // pred_check_branch
      %996 = sbr.rel (0) target = $region61
    $region60: #{tpu_custom_call.1} parent=1 // pred_region
      %s998 = ssub.s32 1920, 1920
      %999 = vsyncadd [#allocation4], %s998
      %s1001 = sshll.u32 [#allocation11], 4
      %s1002 = int_to_ptr.vmem [resolvable:$true] %s1001
      %1004 = dma.vmem_to_hbm [thread:$0]  %s1002, 1920, %s9, [#allocation4]
    $region61: #{tpu_custom_call.1} parent=1 // pred_fallthru
      _
    // Predicated region
    $region62: #{tpu_custom_call.1} parent=1 // pred_check
      _
    $region63: #{tpu_custom_call.1} parent=1 // pred_check_branch
      %1006 = sbr.rel (0) target = $region65
    $region64: #{tpu_custom_call.1} parent=1 // pred_region
      %1007 = dma.done [#allocation4], 1920
    $region65: #{tpu_custom_call.1} parent=1 // pred_fallthru
      _
    %1008 = vsyncpa [#allocation3], 1
    %1009 = vsyncpa [#allocation6], 1
    %1010 = vsyncpa [#allocation9], 1
    %1011 = vsyncpa [#allocation4], 1

</llo_original>
